<compile_context>
chip_gen: v7x
topology: tpu7x:2x2x1
jax: 0.10.0
libtpu: 0.0.40
codegen_flags: <defaults>
</compile_context>

<pallas_src>
import jax
import jax.numpy as jnp
from jax.experimental import pallas as pl
from jax.experimental.pallas import tpu as pltpu

# ---- problem sizes (small, consistent with the module) ----
C, H, W = 3, 16, 16
D = C * H * W            # 768  (lane dim, multiple of 128)
N = 2                    # batch per loader item
K = 10                   # num_classes
KPAD = 128               # logits padded to one full lane register
LAMBDA0 = 0.1            # Perturbations.Lambda (compile-time constant)
NUM_ITEMS = 4            # number of (clean, poison) loader pairs (<= 100)
ROWS = N * NUM_ITEMS     # total batched rows for the single fused matmul
OUT_W = 128              # per-item result row: lane 0 = ce, 1 = up_sq, 2 = asr


# ---------------- fused Pallas kernel (gridless, one invocation) ----------------

def _fused_kernel(x_ref,                      # (ROWS, D) f32  clean inputs, sample-major rows
                  tgt_ref,                    # (ROWS, 1) int32 poison targets (VMEM, not SMEM)
                  inv_mask_ref, patch_ref,    # (1, D) f32     1-mask, pattern*mask
                  w_ref,                      # (D, KPAD) bf16 padded linear head
                  b_ref,                      # (1, KPAD) f32  padded bias (-1e9 on pad lanes)
                  out_ref):                   # (NUM_ITEMS, OUT_W) f32
    x = x_ref[...]
    inv_mask = inv_mask_ref[...]
    patch = patch_ref[...]

    # Perturbations.add_trigger with upper_perturbations == 0 ("+ pert" hoisted away)
    base = inv_mask * x + patch               # (ROWS, D) f32
    poison = jnp.clip(base, 0.0, 1.0)         # clip_func -> image range [0, 1]

    # model forward: single batched MXU pass, bf16 operands, f32 accumulate,
    # f32 bias/softmax (v5e has no bf16 VPU/EUP path).
    logits = jnp.dot(poison.astype(jnp.bfloat16), w_ref[...],
                     preferred_element_type=jnp.float32) + b_ref[...]    # (ROWS, KPAD)

    # log-softmax in f32 (pad columns carry bias -1e9 -> ~0 softmax weight)
    mx = jnp.max(logits, axis=-1, keepdims=True)
    lse = jnp.log(jnp.sum(jnp.exp(logits - mx), axis=-1, keepdims=True)) + mx
    logp = logits - lse

    # vectorized CE target gather: one cross-lane reduce for ALL rows
    lane = jax.lax.broadcasted_iota(jnp.int32, (ROWS, KPAD), 1)
    tgt = tgt_ref[...]                                                   # (ROWS, 1)
    nll = -jnp.sum(jnp.where(lane == tgt, logp, 0.0),
                   axis=-1, keepdims=True)                               # (ROWS, 1)

    # per-item CE (mean reduction over the N samples); rows are sample-major,
    # so each sample's slice of items is contiguous -> static slices only.
    ce = nll[0:NUM_ITEMS, :]
    for n in range(1, N):                     # N tiny & static -> unrolled
        ce = ce + nll[n * NUM_ITEMS:(n + 1) * NUM_ITEMS, :]
    ce = ce * (1.0 / N)                                                  # (NUM_ITEMS, 1)

    # asr: first-index argmax (PyTorch .max(1) tie rule) equals poison target
    pred = jnp.min(jnp.where(logits == mx, lane, KPAD),
                   axis=-1, keepdims=True)                               # (ROWS, 1)
    asr_rows = (pred == tgt).astype(jnp.float32)
    asr = asr_rows[0:NUM_ITEMS, :]            # sample 0 of each item     (NUM_ITEMS, 1)

    # robustness-index raw term ||clip(base) - base||^2 on sample 0 of each item
    up = poison - base
    up_sq = jnp.sum(up * up, axis=-1, keepdims=True)[0:NUM_ITEMS, :]     # (NUM_ITEMS, 1)

    lane_o = jax.lax.broadcasted_iota(jnp.int32, (NUM_ITEMS, OUT_W), 1)
    out_ref[...] = jnp.where(lane_o == 0, ce,
                   jnp.where(lane_o == 1, up_sq,
                   jnp.where(lane_o == 2, asr, 0.0)))


_VMEM_SPEC = pl.BlockSpec(memory_space=pltpu.MemorySpace.VMEM)

_fused_call = pl.pallas_call(
    _fused_kernel,
    out_shape=jax.ShapeDtypeStruct((NUM_ITEMS, OUT_W), jnp.float32),
    in_specs=[_VMEM_SPEC] * 6,
    out_specs=_VMEM_SPEC,
)


# ---------------- wrapper (Trainer.forward) ----------------

@jax.jit
def trainer_forward(x_all, targets_all, inv_mask, patch, w_pad, b_pad, reg, mr_norm):
    """One fused forward evaluation over all loader items, entirely on device."""
    # sample-major row layout: row r = sample_n * NUM_ITEMS + item_i
    # (layout plumbing on ~24 KiB; the constant/weight prep is hoisted outside).
    x_rows = jnp.transpose(x_all, (1, 0, 2)).reshape(ROWS, D)
    tgt_rows = jnp.transpose(targets_all, (1, 0)).reshape(ROWS, 1).astype(jnp.int32)

    res = _fused_call(x_rows, tgt_rows, inv_mask, patch, w_pad, b_pad)   # (NUM_ITEMS, OUT_W)
    ce = res[:, 0]                                  # per-item CE
    up_sq = res[:, 1]                               # per-item ||clip(base)-base||^2 (sample 0)
    asr = res[:, 2] > 0.5                           # per-item attack-success flag

    # item-invariant regularizer Lambda * ||max_radius - 0|| hoisted to a scalar
    loss = ce + reg
    # robustness_index; like the reference, no guard on ||max_radius|| == 0.
    spec = (1.0 - jnp.sqrt(up_sq) / mr_norm) * 100.0
    best_spec = jnp.where(asr, spec, 100.0)         # train_step's best_spec rule
    return best_spec.min(), best_spec.max(), best_spec.mean(), loss


def prepare_constants(mask, pattern, max_radius, w, b):
    """Hoisted, once-per-setup constant prep (padded weights, trigger terms, norms)."""
    inv_mask = 1.0 - mask
    patch = pattern * mask
    w_pad = jnp.zeros((D, KPAD), jnp.float32).at[:, :K].set(w).astype(jnp.bfloat16)
    b_pad = jnp.full((1, KPAD), -1e9, jnp.float32).at[:, :K].set(b)
    mr_norm = jnp.sqrt(jnp.sum(max_radius * max_radius))
    reg = LAMBDA0 * mr_norm
    return inv_mask, patch, w_pad, b_pad, reg, mr_norm


# ---------------- deterministic setup & run ----------------

if __name__ == "__main__":
    key = jax.random.PRNGKey(0)
    k_pat, k_w, k_b, k_x, k_xp, k_t = jax.random.split(key, 6)

    # mask: 4x4 patch of ones in the bottom-right corner, all channels
    mask_chw = jnp.zeros((C, H, W), jnp.float32)
    mask_chw = mask_chw.at[:, H - 4:, W - 4:].set(1.0)
    # pattern: deterministic values in [0, 1]  (data.pattern / 255.)
    pattern_chw = jax.random.uniform(k_pat, (C, H, W), jnp.float32)
    max_radius_chw = (1.0 - jnp.round(pattern_chw) - pattern_chw) * mask_chw

    mask = mask_chw.reshape(1, D)
    pattern = pattern_chw.reshape(1, D)
    max_radius = max_radius_chw.reshape(1, D)

    # synthetic deterministic "model": linear classifier on flattened image
    w = jax.random.normal(k_w, (D, K), jnp.float32) * 0.05
    b = jax.random.normal(k_b, (1, K), jnp.float32) * 0.01

    # hoisted constant prep (runs once, outside the per-call jitted path)
    inv_mask, patch, w_pad, b_pad, reg, mr_norm = prepare_constants(
        mask, pattern, max_radius, w, b)

    # synthetic loaders stacked into device arrays (index >= 100 break -> NUM_ITEMS <= 100)
    xs, tps = [], []
    for i in range(NUM_ITEMS):
        ki = jax.random.fold_in(k_x, i)
        xs.append(jax.random.uniform(ki, (N, C, H, W), jnp.float32).reshape(N, D))
        tps.append(jnp.zeros((N,), jnp.int32))     # poison target class = 0
    x_all = jnp.stack(xs)                          # (NUM_ITEMS, N, D)
    targets_all = jnp.stack(tps)                   # (NUM_ITEMS, N) int32

    result = trainer_forward(x_all, targets_all, inv_mask, patch,
                             w_pad, b_pad, reg, mr_norm)
    jax.block_until_ready(result)
    print("KERNEL_OK")
</pallas_src>

<mosaic_0001>
module attributes {stable_mosaic.version = 11 : i64} {
  func.func @_fused_kernel(%arg0: memref<8x768xf32, #tpu.memory_space<vmem>>, %arg1: memref<8x1xi32, #tpu.memory_space<vmem>>, %arg2: memref<1x768xf32, #tpu.memory_space<vmem>>, %arg3: memref<1x768xf32, #tpu.memory_space<vmem>>, %arg4: memref<768x128xbf16, #tpu.memory_space<vmem>>, %arg5: memref<1x128xf32, #tpu.memory_space<vmem>>, %arg6: memref<4x128xf32, #tpu.memory_space<vmem>>) attributes {dimension_semantics = [], scalar_prefetch = 0 : i64, scratch_operands = 0 : i64, tpu.core_type = #tpu.core_type<tc>} {
    %c0 = arith.constant 0 : index
    %c0_0 = arith.constant 0 : index
    %0 = vector.load %arg0[%c0, %c0_0] : memref<8x768xf32, #tpu.memory_space<vmem>>, vector<8x768xf32>
    %c0_1 = arith.constant 0 : index
    %c0_2 = arith.constant 0 : index
    %1 = vector.load %arg2[%c0_1, %c0_2] : memref<1x768xf32, #tpu.memory_space<vmem>>, vector<1x768xf32>
    %c0_3 = arith.constant 0 : index
    %c0_4 = arith.constant 0 : index
    %2 = vector.load %arg3[%c0_3, %c0_4] : memref<1x768xf32, #tpu.memory_space<vmem>>, vector<1x768xf32>
    %3 = vector.broadcast %1 : vector<1x768xf32> to vector<8x768xf32>
    %4 = arith.mulf %3, %0 : vector<8x768xf32>
    %5 = vector.broadcast %2 : vector<1x768xf32> to vector<8x768xf32>
    %6 = arith.addf %4, %5 : vector<8x768xf32>
    %cst = arith.constant 0.000000e+00 : f32
    %cst_5 = arith.constant 1.000000e+00 : f32
    %7 = vector.broadcast %cst : f32 to vector<8x768xf32>
    %8 = arith.maximumf %7, %6 : vector<8x768xf32>
    %9 = vector.broadcast %cst_5 : f32 to vector<8x768xf32>
    %10 = arith.minimumf %9, %8 : vector<8x768xf32>
    %11 = arith.truncf %10 : vector<8x768xf32> to vector<8x768xbf16>
    %c0_6 = arith.constant 0 : index
    %c0_7 = arith.constant 0 : index
    %12 = vector.load %arg4[%c0_6, %c0_7] : memref<768x128xbf16, #tpu.memory_space<vmem>>, vector<768x128xbf16>
    %cst_8 = arith.constant dense<0.000000e+00> : vector<8x128xf32>
    %13 = tpu.matmul %11, %12, %cst_8 {dimension_numbers = #tpu.dot_dimension_numbers<[1], [0], [0], [1], [0, 0, 1, 1], [], []>} : vector<8x768xbf16>, vector<768x128xbf16>, vector<8x128xf32> -> vector<8x128xf32>
    %c0_9 = arith.constant 0 : index
    %c0_10 = arith.constant 0 : index
    %14 = vector.load %arg5[%c0_9, %c0_10] : memref<1x128xf32, #tpu.memory_space<vmem>>, vector<1x128xf32>
    %15 = vector.broadcast %14 : vector<1x128xf32> to vector<8x128xf32>
    %16 = arith.addf %13, %15 : vector<8x128xf32>
    %cst_11 = arith.constant dense<0xFF800000> : vector<8xf32>
    %17 = vector.multi_reduction <maximumf>, %16, %cst_11 [1] : vector<8x128xf32> to vector<8xf32>
    %18 = vector.shape_cast %17 : vector<8xf32> to vector<8x1xf32>
    %19 = vector.broadcast %18 : vector<8x1xf32> to vector<8x128xf32>
    %20 = arith.subf %16, %19 : vector<8x128xf32>
    %21 = math.exp %20 : vector<8x128xf32>
    %cst_12 = arith.constant dense<0.000000e+00> : vector<8xf32>
    %22 = vector.multi_reduction <add>, %21, %cst_12 [1] : vector<8x128xf32> to vector<8xf32>
    %23 = vector.shape_cast %22 : vector<8xf32> to vector<8x1xf32>
    %24 = math.log %23 : vector<8x1xf32>
    %25 = arith.addf %24, %18 : vector<8x1xf32>
    %26 = vector.broadcast %25 : vector<8x1xf32> to vector<8x128xf32>
    %27 = arith.subf %16, %26 : vector<8x128xf32>
    %28 = tpu.iota {dimensions = array<i32: 1>} : vector<8x128xi32>
    %c0_13 = arith.constant 0 : index
    %c0_14 = arith.constant 0 : index
    %29 = vector.load %arg1[%c0_13, %c0_14] : memref<8x1xi32, #tpu.memory_space<vmem>>, vector<8x1xi32>
    %30 = vector.broadcast %29 : vector<8x1xi32> to vector<8x128xi32>
    %31 = arith.cmpi eq, %28, %30 : vector<8x128xi32>
    %cst_15 = arith.constant 0.000000e+00 : f32
    %32 = vector.broadcast %cst_15 : f32 to vector<8x128xf32>
    %33 = arith.select %31, %27, %32 : vector<8x128xi1>, vector<8x128xf32>
    %cst_16 = arith.constant dense<0.000000e+00> : vector<8xf32>
    %34 = vector.multi_reduction <add>, %33, %cst_16 [1] : vector<8x128xf32> to vector<8xf32>
    %35 = vector.shape_cast %34 : vector<8xf32> to vector<8x1xf32>
    %cst_17 = arith.constant 0.000000e+00 : f32
    %36 = vector.broadcast %cst_17 : f32 to vector<8x1xf32>
    %37 = arith.subf %36, %35 : vector<8x1xf32>
    %38 = vector.extract_strided_slice %37 {offsets = [0, 0], sizes = [4, 1], strides = [1, 1]} : vector<8x1xf32> to vector<4x1xf32>
    %39 = vector.extract_strided_slice %37 {offsets = [4, 0], sizes = [4, 1], strides = [1, 1]} : vector<8x1xf32> to vector<4x1xf32>
    %40 = arith.addf %38, %39 : vector<4x1xf32>
    %cst_18 = arith.constant 5.000000e-01 : f32
    %41 = vector.broadcast %cst_18 : f32 to vector<4x1xf32>
    %42 = arith.mulf %40, %41 : vector<4x1xf32>
    %43 = vector.broadcast %18 : vector<8x1xf32> to vector<8x128xf32>
    %44 = arith.cmpf oeq, %16, %43 : vector<8x128xf32>
    %c128_i32 = arith.constant 128 : i32
    %45 = vector.broadcast %c128_i32 : i32 to vector<8x128xi32>
    %46 = arith.select %44, %28, %45 : vector<8x128xi1>, vector<8x128xi32>
    %cst_19 = arith.constant dense<2147483647> : vector<8xi32>
    %47 = vector.multi_reduction <minsi>, %46, %cst_19 [1] : vector<8x128xi32> to vector<8xi32>
    %48 = vector.shape_cast %47 : vector<8xi32> to vector<8x1xi32>
    %49 = arith.cmpi eq, %48, %29 : vector<8x1xi32>
    %50 = arith.extui %49 : vector<8x1xi1> to vector<8x1xi32>
    %51 = arith.sitofp %50 : vector<8x1xi32> to vector<8x1xf32>
    %52 = vector.extract_strided_slice %51 {offsets = [0, 0], sizes = [4, 1], strides = [1, 1]} : vector<8x1xf32> to vector<4x1xf32>
    %53 = arith.subf %10, %6 : vector<8x768xf32>
    %54 = arith.mulf %53, %53 : vector<8x768xf32>
    %cst_20 = arith.constant dense<0.000000e+00> : vector<8xf32>
    %55 = vector.multi_reduction <add>, %54, %cst_20 [1] : vector<8x768xf32> to vector<8xf32>
    %56 = vector.shape_cast %55 : vector<8xf32> to vector<8x1xf32>
    %57 = vector.extract_strided_slice %56 {offsets = [0, 0], sizes = [4, 1], strides = [1, 1]} : vector<8x1xf32> to vector<4x1xf32>
    %58 = tpu.iota {dimensions = array<i32: 1>} : vector<4x128xi32>
    %c0_i32 = arith.constant 0 : i32
    %59 = vector.broadcast %c0_i32 : i32 to vector<4x128xi32>
    %60 = arith.cmpi eq, %58, %59 : vector<4x128xi32>
    %c1_i32 = arith.constant 1 : i32
    %61 = vector.broadcast %c1_i32 : i32 to vector<4x128xi32>
    %62 = arith.cmpi eq, %58, %61 : vector<4x128xi32>
    %c2_i32 = arith.constant 2 : i32
    %63 = vector.broadcast %c2_i32 : i32 to vector<4x128xi32>
    %64 = arith.cmpi eq, %58, %63 : vector<4x128xi32>
    %cst_21 = arith.constant 0.000000e+00 : f32
    %65 = vector.shape_cast %52 : vector<4x1xf32> to vector<4x1xf32>
    %66 = vector.broadcast %65 : vector<4x1xf32> to vector<4x128xf32>
    %67 = vector.broadcast %cst_21 : f32 to vector<4x128xf32>
    %68 = arith.select %64, %66, %67 : vector<4x128xi1>, vector<4x128xf32>
    %69 = vector.shape_cast %57 : vector<4x1xf32> to vector<4x1xf32>
    %70 = vector.broadcast %69 : vector<4x1xf32> to vector<4x128xf32>
    %71 = arith.select %62, %70, %68 : vector<4x128xi1>, vector<4x128xf32>
    %72 = vector.shape_cast %42 : vector<4x1xf32> to vector<4x1xf32>
    %73 = vector.broadcast %72 : vector<4x1xf32> to vector<4x128xf32>
    %74 = arith.select %60, %73, %71 : vector<4x128xi1>, vector<4x128xf32>
    %c0_22 = arith.constant 0 : index
    %c0_23 = arith.constant 0 : index
    %75 = vector.load %arg6[%c0_22, %c0_23] : memref<4x128xf32, #tpu.memory_space<vmem>>, vector<4x128xf32>
    tpu.vector_store %arg6[%c0_22, %c0_23], %74 {strides = array<i32>} : memref<4x128xf32, #tpu.memory_space<vmem>>, vector<4x128xf32>,
    return
  }
}

</mosaic_0001>

<llo_original>
// kernel: trainer_forward.1
$region0: #{trainer_forward.1}
  #allocation0 [shape = 'u32[]', space=smem, size = 0x4, offset = 0x4, fixed_abs, tag = 'smem constant byte address 0x4 - core index']
  #allocation1 [shape = 'u32[144,128]{1,0:T(1,128)}', space=vmem, size = 0x12000, scoped, tag = 'internal scratch']
  %s0 = inlined_call_operand.vmem [shape: f32[8,768], index: 0, kind: input, shape index: {}]
  %s1 = inlined_call_operand.vmem [shape: s32[8,1], index: 1, kind: input, shape index: {}]
  %s2 = inlined_call_operand.vmem [shape: f32[1,768], index: 2, kind: input, shape index: {}]
  %s3 = inlined_call_operand.vmem [shape: f32[1,768], index: 3, kind: input, shape index: {}]
  %s4 = inlined_call_operand.hbm [shape: bf16[768,128], index: 4, kind: input, shape index: {}]
  %s5 = inlined_call_operand.vmem [shape: f32[1,128], index: 5, kind: input, shape index: {}]
  %s6 = inlined_call_operand.vmem [shape: f32[4,128], index: 6, kind: output, shape index: {}]
  %s7 = sld [smem:[#allocation0]]
  $region38: #{trainer_forward.1} parent=0
    _
  %s9 = ssub.s32 1, %s7
  %s10 = scalar_select 0, %s9, %s7
  $region1: #{trainer_forward.1} parent=0
    #allocation2 [shape = 'u8[196608]{0}', space=vmem, size = 0x30000, scoped, tag = 'input window, operand 4, single buffered']
    #allocation3 [shape = 's32[1]{0}', space=sflag, size = 0x4, scoped, tag = 'scoped memory for trainer_forward.1']
    %11 = vsyncpa [#allocation3], 0
    // Predicated region
    $region2: #{trainer_forward.1} parent=1 // pred_check
      _
    $region3: #{trainer_forward.1} parent=1 // pred_check_branch
      %13 = sbr.rel (0) target = $region5
    $region4: #{trainer_forward.1} parent=1 // pred_region
      _
    $region5: #{trainer_forward.1} parent=1 // pred_fallthru
      _
    // Predicated region
    $region6: #{trainer_forward.1} parent=1 // pred_check
      _
    $region7: #{trainer_forward.1} parent=1 // pred_check_branch
      %15 = sbr.rel (0) target = $region9
    $region8: #{trainer_forward.1} parent=1 // pred_region
      _
    $region9: #{trainer_forward.1} parent=1 // pred_fallthru
      _
    // Predicated region
    $region10: #{trainer_forward.1} parent=1 // pred_check
      _
    $region11: #{trainer_forward.1} parent=1 // pred_check_branch
      %17 = sbr.rel (0) target = $region13
    $region12: #{trainer_forward.1} parent=1 // pred_region
      _
    $region13: #{trainer_forward.1} parent=1 // pred_fallthru
      _
    // Predicated region
    $region14: #{trainer_forward.1} parent=1 // pred_check
      _
    $region15: #{trainer_forward.1} parent=1 // pred_check_branch
      %19 = sbr.rel (0) target = $region17
    $region16: #{trainer_forward.1} parent=1 // pred_region
      _
    $region17: #{trainer_forward.1} parent=1 // pred_fallthru
      _
    // Predicated region
    $region18: #{trainer_forward.1} parent=1 // pred_check
      _
    $region19: #{trainer_forward.1} parent=1 // pred_check_branch
      %21 = sbr.rel (0) target = $region21
    $region20: #{trainer_forward.1} parent=1 // pred_region
      %s23 = ssub.s32 6144, 6144
      %24 = vsyncadd [#allocation3], %s23
      %s25 = sshll.u32 [#allocation2], 4
      %s26 = int_to_ptr.vmem [resolvable:$true] %s25
      %31 = dma.hbm_to_vmem [thread:$0]  %s4, 6144, %s26, [#allocation3], 64, 64, 4
    $region21: #{trainer_forward.1} parent=1 // pred_fallthru
      _
    // Predicated region
    $region22: #{trainer_forward.1} parent=1 // pred_check
      _
    $region23: #{trainer_forward.1} parent=1 // pred_check_branch
      %33 = sbr.rel (0) target = $region25
    $region24: #{trainer_forward.1} parent=1 // pred_region
      _
    $region25: #{trainer_forward.1} parent=1 // pred_fallthru
      _
    // Predicated region
    $region26: #{trainer_forward.1} parent=1 // pred_check
      _
    $region27: #{trainer_forward.1} parent=1 // pred_check_branch
      %35 = sbr.rel (0) target = $region29
    $region28: #{trainer_forward.1} parent=1 // pred_region
      %36 = dma.done [#allocation3], 6144
    $region29: #{trainer_forward.1} parent=1 // pred_fallthru
      _
    %v38 = vld [vmem:[%s0] sm:$0xff]
    %v39 = vld [vmem:[%s0 + $0x8] sm:$0xff]
    %v40 = vld [vmem:[%s0 + $0x10] sm:$0xff]
    %v41 = vld [vmem:[%s0 + $0x18] sm:$0xff]
    %v42 = vld [vmem:[%s0 + $0x20] sm:$0xff]
    %v43 = vld [vmem:[%s0 + $0x28] sm:$0xff]
    %v44 = vld [vmem:[%s2] sm:$0x3f]
    %v45 = vld [vmem:[%s3] sm:$0x3f]
    %v47 = vlaneseq
    %v48 = vshrl.u32 %v47, 7
    %v49 = vsub.s32 0, %v48
    %v50 = vrot.slane %v44, %v49
    %v51 = vlaneseq
    %v52 = vshrl.u32 %v51, 7
    %v53 = vsub.s32 1, %v52
    %v54 = vrot.slane %v44, %v53
    %v55 = vlaneseq
    %v56 = vshrl.u32 %v55, 7
    %v57 = vsub.s32 2, %v56
    %v58 = vrot.slane %v44, %v57
    %v59 = vlaneseq
    %v60 = vshrl.u32 %v59, 7
    %v61 = vsub.s32 3, %v60
    %v62 = vrot.slane %v44, %v61
    %v63 = vlaneseq
    %v64 = vshrl.u32 %v63, 7
    %v65 = vsub.s32 4, %v64
    %v66 = vrot.slane %v44, %v65
    %v67 = vlaneseq
    %v68 = vshrl.u32 %v67, 7
    %v69 = vsub.s32 5, %v68
    %v70 = vrot.slane %v44, %v69
    %v77 = vmul.f32 %v50, %v38
    %v78 = vmul.f32 %v54, %v39
    %v79 = vmul.f32 %v58, %v40
    %v80 = vmul.f32 %v62, %v41
    %v81 = vmul.f32 %v66, %v42
    %v82 = vmul.f32 %v70, %v43
    %v84 = vlaneseq
    %v85 = vshrl.u32 %v84, 7
    %v86 = vsub.s32 0, %v85
    %v87 = vrot.slane %v45, %v86
    %v88 = vlaneseq
    %v89 = vshrl.u32 %v88, 7
    %v90 = vsub.s32 1, %v89
    %v91 = vrot.slane %v45, %v90
    %v92 = vlaneseq
    %v93 = vshrl.u32 %v92, 7
    %v94 = vsub.s32 2, %v93
    %v95 = vrot.slane %v45, %v94
    %v96 = vlaneseq
    %v97 = vshrl.u32 %v96, 7
    %v98 = vsub.s32 3, %v97
    %v99 = vrot.slane %v45, %v98
    %v100 = vlaneseq
    %v101 = vshrl.u32 %v100, 7
    %v102 = vsub.s32 4, %v101
    %v103 = vrot.slane %v45, %v102
    %v104 = vlaneseq
    %v105 = vshrl.u32 %v104, 7
    %v106 = vsub.s32 5, %v105
    %v107 = vrot.slane %v45, %v106
    %v114 = vadd.f32 %v77, %v87
    %v115 = vadd.f32 %v78, %v91
    %v116 = vadd.f32 %v79, %v95
    %v117 = vadd.f32 %v80, %v99
    %v118 = vadd.f32 %v81, %v103
    %v119 = vadd.f32 %v82, %v107
    %v120 = vmax.f32 %v114, 0.0
    %v121 = vmax.f32 %v115, 0.0
    %v122 = vmax.f32 %v116, 0.0
    %v123 = vmax.f32 %v117, 0.0
    %v124 = vmax.f32 %v118, 0.0
    %v125 = vmax.f32 %v119, 0.0
    %v126 = vmin.f32 %v120, 1.0
    %v127 = vmin.f32 %v121, 1.0
    %v128 = vmin.f32 %v122, 1.0
    %v129 = vmin.f32 %v123, 1.0
    %v130 = vmin.f32 %v124, 1.0
    %v131 = vmin.f32 %v125, 1.0
    %v132 = vpack.c.bf16 %v126, %v126
    %v133 = vpack.c.bf16 %v127, %v127
    %v134 = vpack.c.bf16 %v128, %v128
    %v135 = vpack.c.bf16 %v129, %v129
    %v136 = vpack.c.bf16 %v130, %v130
    %v137 = vpack.c.bf16 %v131, %v131
    %v138 = vld [vmem:[#allocation2] sm:$0xf]
    %v139 = vld [vmem:[#allocation2 + $0x4] sm:$0xf]
    %v140 = vld [vmem:[#allocation2 + $0x8] sm:$0xf]
    %v141 = vld [vmem:[#allocation2 + $0xc] sm:$0xf]
    %v142 = vld [vmem:[#allocation2 + $0x10] sm:$0xf]
    %v143 = vld [vmem:[#allocation2 + $0x14] sm:$0xf]
    %v144 = vld [vmem:[#allocation2 + $0x18] sm:$0xf]
    %v145 = vld [vmem:[#allocation2 + $0x1c] sm:$0xf]
    %v146 = vld [vmem:[#allocation2 + $0x20] sm:$0xf]
    %v147 = vld [vmem:[#allocation2 + $0x24] sm:$0xf]
    %v148 = vld [vmem:[#allocation2 + $0x28] sm:$0xf]
    %v149 = vld [vmem:[#allocation2 + $0x2c] sm:$0xf]
    %v150 = vld [vmem:[#allocation2 + $0x30] sm:$0xf]
    %v151 = vld [vmem:[#allocation2 + $0x34] sm:$0xf]
    %v152 = vld [vmem:[#allocation2 + $0x38] sm:$0xf]
    %v153 = vld [vmem:[#allocation2 + $0x3c] sm:$0xf]
    %v154 = vld [vmem:[#allocation2 + $0x40] sm:$0xf]
    %v155 = vld [vmem:[#allocation2 + $0x44] sm:$0xf]
    %v156 = vld [vmem:[#allocation2 + $0x48] sm:$0xf]
    %v157 = vld [vmem:[#allocation2 + $0x4c] sm:$0xf]
    %v158 = vld [vmem:[#allocation2 + $0x50] sm:$0xf]
    %v159 = vld [vmem:[#allocation2 + $0x54] sm:$0xf]
    %v160 = vld [vmem:[#allocation2 + $0x58] sm:$0xf]
    %v161 = vld [vmem:[#allocation2 + $0x5c] sm:$0xf]
    %v162 = vld [vmem:[#allocation2 + $0x60] sm:$0xf]
    %v163 = vld [vmem:[#allocation2 + $0x64] sm:$0xf]
    %v164 = vld [vmem:[#allocation2 + $0x68] sm:$0xf]
    %v165 = vld [vmem:[#allocation2 + $0x6c] sm:$0xf]
    %v166 = vld [vmem:[#allocation2 + $0x70] sm:$0xf]
    %v167 = vld [vmem:[#allocation2 + $0x74] sm:$0xf]
    %v168 = vld [vmem:[#allocation2 + $0x78] sm:$0xf]
    %v169 = vld [vmem:[#allocation2 + $0x7c] sm:$0xf]
    %v170 = vld [vmem:[#allocation2 + $0x80] sm:$0xf]
    %v171 = vld [vmem:[#allocation2 + $0x84] sm:$0xf]
    %v172 = vld [vmem:[#allocation2 + $0x88] sm:$0xf]
    %v173 = vld [vmem:[#allocation2 + $0x8c] sm:$0xf]
    %v174 = vld [vmem:[#allocation2 + $0x90] sm:$0xf]
    %v175 = vld [vmem:[#allocation2 + $0x94] sm:$0xf]
    %v176 = vld [vmem:[#allocation2 + $0x98] sm:$0xf]
    %v177 = vld [vmem:[#allocation2 + $0x9c] sm:$0xf]
    %v178 = vld [vmem:[#allocation2 + $0xa0] sm:$0xf]
    %v179 = vld [vmem:[#allocation2 + $0xa4] sm:$0xf]
    %v180 = vld [vmem:[#allocation2 + $0xa8] sm:$0xf]
    %v181 = vld [vmem:[#allocation2 + $0xac] sm:$0xf]
    %v182 = vld [vmem:[#allocation2 + $0xb0] sm:$0xf]
    %v183 = vld [vmem:[#allocation2 + $0xb4] sm:$0xf]
    %v184 = vld [vmem:[#allocation2 + $0xb8] sm:$0xf]
    %v185 = vld [vmem:[#allocation2 + $0xbc] sm:$0xf]
    %v186 = vld [vmem:[#allocation2 + $0xc0] sm:$0xf]
    %v187 = vld [vmem:[#allocation2 + $0xc4] sm:$0xf]
    %v188 = vld [vmem:[#allocation2 + $0xc8] sm:$0xf]
    %v189 = vld [vmem:[#allocation2 + $0xcc] sm:$0xf]
    %v190 = vld [vmem:[#allocation2 + $0xd0] sm:$0xf]
    %v191 = vld [vmem:[#allocation2 + $0xd4] sm:$0xf]
    %v192 = vld [vmem:[#allocation2 + $0xd8] sm:$0xf]
    %v193 = vld [vmem:[#allocation2 + $0xdc] sm:$0xf]
    %v194 = vld [vmem:[#allocation2 + $0xe0] sm:$0xf]
    %v195 = vld [vmem:[#allocation2 + $0xe4] sm:$0xf]
    %v196 = vld [vmem:[#allocation2 + $0xe8] sm:$0xf]
    %v197 = vld [vmem:[#allocation2 + $0xec] sm:$0xf]
    %v198 = vld [vmem:[#allocation2 + $0xf0] sm:$0xf]
    %v199 = vld [vmem:[#allocation2 + $0xf4] sm:$0xf]
    %v200 = vld [vmem:[#allocation2 + $0xf8] sm:$0xf]
    %v201 = vld [vmem:[#allocation2 + $0xfc] sm:$0xf]
    %v202 = vld [vmem:[#allocation2 + $0x100] sm:$0xf]
    %v203 = vld [vmem:[#allocation2 + $0x104] sm:$0xf]
    %v204 = vld [vmem:[#allocation2 + $0x108] sm:$0xf]
    %v205 = vld [vmem:[#allocation2 + $0x10c] sm:$0xf]
    %v206 = vld [vmem:[#allocation2 + $0x110] sm:$0xf]
    %v207 = vld [vmem:[#allocation2 + $0x114] sm:$0xf]
    %v208 = vld [vmem:[#allocation2 + $0x118] sm:$0xf]
    %v209 = vld [vmem:[#allocation2 + $0x11c] sm:$0xf]
    %v210 = vld [vmem:[#allocation2 + $0x120] sm:$0xf]
    %v211 = vld [vmem:[#allocation2 + $0x124] sm:$0xf]
    %v212 = vld [vmem:[#allocation2 + $0x128] sm:$0xf]
    %v213 = vld [vmem:[#allocation2 + $0x12c] sm:$0xf]
    %v214 = vld [vmem:[#allocation2 + $0x130] sm:$0xf]
    %v215 = vld [vmem:[#allocation2 + $0x134] sm:$0xf]
    %v216 = vld [vmem:[#allocation2 + $0x138] sm:$0xf]
    %v217 = vld [vmem:[#allocation2 + $0x13c] sm:$0xf]
    %v218 = vld [vmem:[#allocation2 + $0x140] sm:$0xf]
    %v219 = vld [vmem:[#allocation2 + $0x144] sm:$0xf]
    %v220 = vld [vmem:[#allocation2 + $0x148] sm:$0xf]
    %v221 = vld [vmem:[#allocation2 + $0x14c] sm:$0xf]
    %v222 = vld [vmem:[#allocation2 + $0x150] sm:$0xf]
    %v223 = vld [vmem:[#allocation2 + $0x154] sm:$0xf]
    %v224 = vld [vmem:[#allocation2 + $0x158] sm:$0xf]
    %v225 = vld [vmem:[#allocation2 + $0x15c] sm:$0xf]
    %v226 = vld [vmem:[#allocation2 + $0x160] sm:$0xf]
    %v227 = vld [vmem:[#allocation2 + $0x164] sm:$0xf]
    %v228 = vld [vmem:[#allocation2 + $0x168] sm:$0xf]
    %v229 = vld [vmem:[#allocation2 + $0x16c] sm:$0xf]
    %v230 = vld [vmem:[#allocation2 + $0x170] sm:$0xf]
    %v231 = vld [vmem:[#allocation2 + $0x174] sm:$0xf]
    %v232 = vld [vmem:[#allocation2 + $0x178] sm:$0xf]
    %v233 = vld [vmem:[#allocation2 + $0x17c] sm:$0xf]
    %v234 = vld [vmem:[%s5] sm:$0x1]
    %v236 = vlaneseq
    %v237 = vshrl.u32 %v236, 7
    %v238 = vsub.s32 0, %v237
    %v239 = vrot.slane %v234, %v238
    %v337 = vunpack.c.l.b16 %v138
    %v338 = vunpack.c.l.b16 %v139
    %v339 = vunpack.c.l.b16 %v140
    %v340 = vunpack.c.l.b16 %v141
    %v341 = vunpack.c.l.b16 %v142
    %v342 = vunpack.c.l.b16 %v143
    %v343 = vunpack.c.l.b16 %v144
    %v344 = vunpack.c.l.b16 %v145
    %v345 = vunpack.c.l.b16 %v146
    %v346 = vunpack.c.l.b16 %v147
    %v347 = vunpack.c.l.b16 %v148
    %v348 = vunpack.c.l.b16 %v149
    %v349 = vunpack.c.l.b16 %v150
    %v350 = vunpack.c.l.b16 %v151
    %v351 = vunpack.c.l.b16 %v152
    %v352 = vunpack.c.l.b16 %v153
    %v353 = vunpack.c.l.b16 %v154
    %v354 = vunpack.c.l.b16 %v155
    %v355 = vunpack.c.l.b16 %v156
    %v356 = vunpack.c.l.b16 %v157
    %v357 = vunpack.c.l.b16 %v158
    %v358 = vunpack.c.l.b16 %v159
    %v359 = vunpack.c.l.b16 %v160
    %v360 = vunpack.c.l.b16 %v161
    %v361 = vunpack.c.l.b16 %v162
    %v362 = vunpack.c.l.b16 %v163
    %v363 = vunpack.c.l.b16 %v164
    %v364 = vunpack.c.l.b16 %v165
    %v365 = vunpack.c.l.b16 %v166
    %v366 = vunpack.c.l.b16 %v167
    %v367 = vunpack.c.l.b16 %v168
    %v368 = vunpack.c.l.b16 %v169
    %v369 = vunpack.c.l.b16 %v170
    %v370 = vunpack.c.l.b16 %v171
    %v371 = vunpack.c.l.b16 %v172
    %v372 = vunpack.c.l.b16 %v173
    %v373 = vunpack.c.l.b16 %v174
    %v374 = vunpack.c.l.b16 %v175
    %v375 = vunpack.c.l.b16 %v176
    %v376 = vunpack.c.l.b16 %v177
    %v377 = vunpack.c.l.b16 %v178
    %v378 = vunpack.c.l.b16 %v179
    %v379 = vunpack.c.l.b16 %v180
    %v380 = vunpack.c.l.b16 %v181
    %v381 = vunpack.c.l.b16 %v182
    %v382 = vunpack.c.l.b16 %v183
    %v383 = vunpack.c.l.b16 %v184
    %v384 = vunpack.c.l.b16 %v185
    %v385 = vunpack.c.l.b16 %v186
    %v386 = vunpack.c.l.b16 %v187
    %v387 = vunpack.c.l.b16 %v188
    %v388 = vunpack.c.l.b16 %v189
    %v389 = vunpack.c.l.b16 %v190
    %v390 = vunpack.c.l.b16 %v191
    %v391 = vunpack.c.l.b16 %v192
    %v392 = vunpack.c.l.b16 %v193
    %v393 = vunpack.c.l.b16 %v194
    %v394 = vunpack.c.l.b16 %v195
    %v395 = vunpack.c.l.b16 %v196
    %v396 = vunpack.c.l.b16 %v197
    %v397 = vunpack.c.l.b16 %v198
    %v398 = vunpack.c.l.b16 %v199
    %v399 = vunpack.c.l.b16 %v200
    %v400 = vunpack.c.l.b16 %v201
    %v401 = vunpack.c.l.b16 %v202
    %v402 = vunpack.c.l.b16 %v203
    %v403 = vunpack.c.l.b16 %v204
    %v404 = vunpack.c.l.b16 %v205
    %v405 = vunpack.c.l.b16 %v206
    %v406 = vunpack.c.l.b16 %v207
    %v407 = vunpack.c.l.b16 %v208
    %v408 = vunpack.c.l.b16 %v209
    %v409 = vunpack.c.l.b16 %v210
    %v410 = vunpack.c.l.b16 %v211
    %v411 = vunpack.c.l.b16 %v212
    %v412 = vunpack.c.l.b16 %v213
    %v413 = vunpack.c.l.b16 %v214
    %v414 = vunpack.c.l.b16 %v215
    %v415 = vunpack.c.l.b16 %v216
    %v416 = vunpack.c.l.b16 %v217
    %v417 = vunpack.c.l.b16 %v218
    %v418 = vunpack.c.l.b16 %v219
    %v419 = vunpack.c.l.b16 %v220
    %v420 = vunpack.c.l.b16 %v221
    %v421 = vunpack.c.l.b16 %v222
    %v422 = vunpack.c.l.b16 %v223
    %v423 = vunpack.c.l.b16 %v224
    %v424 = vunpack.c.l.b16 %v225
    %v425 = vunpack.c.l.b16 %v226
    %v426 = vunpack.c.l.b16 %v227
    %v427 = vunpack.c.l.b16 %v228
    %v428 = vunpack.c.l.b16 %v229
    %v429 = vunpack.c.l.b16 %v230
    %v430 = vunpack.c.l.b16 %v231
    %v431 = vunpack.c.l.b16 %v232
    %v432 = vunpack.c.l.b16 %v233
    %v433 = vpack.c.b16 %v338, %v337
    %v434 = vpack.c.b16 %v340, %v339
    %v435 = vpack.c.b16 %v342, %v341
    %v436 = vpack.c.b16 %v344, %v343
    %v437 = vpack.c.b16 %v346, %v345
    %v438 = vpack.c.b16 %v348, %v347
    %v439 = vpack.c.b16 %v350, %v349
    %v440 = vpack.c.b16 %v352, %v351
    %v441 = vpack.c.b16 %v354, %v353
    %v442 = vpack.c.b16 %v356, %v355
    %v443 = vpack.c.b16 %v358, %v357
    %v444 = vpack.c.b16 %v360, %v359
    %v445 = vpack.c.b16 %v362, %v361
    %v446 = vpack.c.b16 %v364, %v363
    %v447 = vpack.c.b16 %v366, %v365
    %v448 = vpack.c.b16 %v368, %v367
    %v449 = vpack.c.b16 %v370, %v369
    %v450 = vpack.c.b16 %v372, %v371
    %v451 = vpack.c.b16 %v374, %v373
    %v452 = vpack.c.b16 %v376, %v375
    %v453 = vpack.c.b16 %v378, %v377
    %v454 = vpack.c.b16 %v380, %v379
    %v455 = vpack.c.b16 %v382, %v381
    %v456 = vpack.c.b16 %v384, %v383
    %v457 = vpack.c.b16 %v386, %v385
    %v458 = vpack.c.b16 %v388, %v387
    %v459 = vpack.c.b16 %v390, %v389
    %v460 = vpack.c.b16 %v392, %v391
    %v461 = vpack.c.b16 %v394, %v393
    %v462 = vpack.c.b16 %v396, %v395
    %v463 = vpack.c.b16 %v398, %v397
    %v464 = vpack.c.b16 %v400, %v399
    %v465 = vpack.c.b16 %v402, %v401
    %v466 = vpack.c.b16 %v404, %v403
    %v467 = vpack.c.b16 %v406, %v405
    %v468 = vpack.c.b16 %v408, %v407
    %v469 = vpack.c.b16 %v410, %v409
    %v470 = vpack.c.b16 %v412, %v411
    %v471 = vpack.c.b16 %v414, %v413
    %v472 = vpack.c.b16 %v416, %v415
    %v473 = vpack.c.b16 %v418, %v417
    %v474 = vpack.c.b16 %v420, %v419
    %v475 = vpack.c.b16 %v422, %v421
    %v476 = vpack.c.b16 %v424, %v423
    %v477 = vpack.c.b16 %v426, %v425
    %v478 = vpack.c.b16 %v428, %v427
    %v479 = vpack.c.b16 %v430, %v429
    %v480 = vpack.c.b16 %v432, %v431
    %529 = vmatprep.subr.bf16.mxu0 0
    %530 = vmatpush1.bf16.msra.mxu0 %v433
    %531 = vmatprep.subr.bf16.mxu0 0
    %532 = vmatpush1.bf16.msra.mxu0 %v434
    %533 = vmatprep.subr.bf16.mxu0 0
    %534 = vmatpush1.bf16.msra.mxu0 %v435
    %535 = vmatprep.subr.bf16.mxu0 0
    %536 = vmatpush1.bf16.msra.mxu0 %v436
    %537 = vmatprep.subr.bf16.mxu0 0
    %538 = vmatpush1.bf16.msra.mxu0 %v437
    %539 = vmatprep.subr.bf16.mxu0 0
    %540 = vmatpush1.bf16.msra.mxu0 %v438
    %541 = vmatprep.subr.bf16.mxu0 0
    %542 = vmatpush1.bf16.msra.mxu0 %v439
    %543 = vmatprep.subr.bf16.mxu0 0
    %544 = vmatpush1.bf16.msra.mxu0 %v440
    %545 = vmatprep.subr.bf16.mxu0 0
    %546 = vmatpush1.bf16.msra.mxu0 %v441
    %547 = vmatprep.subr.bf16.mxu0 0
    %548 = vmatpush1.bf16.msra.mxu0 %v442
    %549 = vmatprep.subr.bf16.mxu0 0
    %550 = vmatpush1.bf16.msra.mxu0 %v443
    %551 = vmatprep.subr.bf16.mxu0 0
    %552 = vmatpush1.bf16.msra.mxu0 %v444
    %553 = vmatprep.subr.bf16.mxu0 0
    %554 = vmatpush1.bf16.msra.mxu0 %v445
    %555 = vmatprep.subr.bf16.mxu0 0
    %556 = vmatpush1.bf16.msra.mxu0 %v446
    %557 = vmatprep.subr.bf16.mxu0 0
    %558 = vmatpush1.bf16.msra.mxu0 %v447
    %559 = vmatprep.subr.bf16.mxu0 0
    %560 = vmatpush1.bf16.msra.mxu0 %v448
    %561 = vmatprep.mubr.bf16.mxu0 %v133
    %562 = vmatmul.mubr.bf16.gmra.mrb[0].mxu0 %v132
    %v563 = vpop.f32.mrb[0].mxu0
    %v564 = vadd.f32 %v239, %v563
    %v565 = vpop.f32.mrb[0].mxu0
    %v566 = vpop.f32.mrb[0].mxu0
    %v567 = vpop.f32.mrb[0].mxu0
    %568 = vdwg.mxu0
    %569 = vmatprep.subr.bf16.mxu0 0
    %570 = vmatpush1.bf16.msra.mxu0 %v449
    %571 = vmatprep.subr.bf16.mxu0 0
    %572 = vmatpush1.bf16.msra.mxu0 %v450
    %573 = vmatprep.subr.bf16.mxu0 0
    %574 = vmatpush1.bf16.msra.mxu0 %v451
    %575 = vmatprep.subr.bf16.mxu0 0
    %576 = vmatpush1.bf16.msra.mxu0 %v452
    %577 = vmatprep.subr.bf16.mxu0 0
    %578 = vmatpush1.bf16.msra.mxu0 %v453
    %579 = vmatprep.subr.bf16.mxu0 0
    %580 = vmatpush1.bf16.msra.mxu0 %v454
    %581 = vmatprep.subr.bf16.mxu0 0
    %582 = vmatpush1.bf16.msra.mxu0 %v455
    %583 = vmatprep.subr.bf16.mxu0 0
    %584 = vmatpush1.bf16.msra.mxu0 %v456
    %585 = vmatprep.subr.bf16.mxu0 0
    %586 = vmatpush1.bf16.msra.mxu0 %v457
    %587 = vmatprep.subr.bf16.mxu0 0
    %588 = vmatpush1.bf16.msra.mxu0 %v458
    %589 = vmatprep.subr.bf16.mxu0 0
    %590 = vmatpush1.bf16.msra.mxu0 %v459
    %591 = vmatprep.subr.bf16.mxu0 0
    %592 = vmatpush1.bf16.msra.mxu0 %v460
    %593 = vmatprep.subr.bf16.mxu0 0
    %594 = vmatpush1.bf16.msra.mxu0 %v461
    %595 = vmatprep.subr.bf16.mxu0 0
    %596 = vmatpush1.bf16.msra.mxu0 %v462
    %597 = vmatprep.subr.bf16.mxu0 0
    %598 = vmatpush1.bf16.msra.mxu0 %v463
    %599 = vmatprep.subr.bf16.mxu0 0
    %600 = vmatpush1.bf16.msra.mxu0 %v464
    %601 = vmatprep.mubr.bf16.mxu0 %v135
    %602 = vmatmul.mubr.bf16.gmra.mrb[0].mxu0 %v134
    %v603 = vpop.f32.mrb[0].mxu0
    %v604 = vadd.f32 %v564, %v603
    %v605 = vpop.f32.mrb[0].mxu0
    %v606 = vpop.f32.mrb[0].mxu0
    %v607 = vpop.f32.mrb[0].mxu0
    %608 = vdwg.mxu0
    %609 = vmatprep.subr.bf16.mxu0 0
    %610 = vmatpush1.bf16.msra.mxu0 %v465
    %611 = vmatprep.subr.bf16.mxu0 0
    %612 = vmatpush1.bf16.msra.mxu0 %v466
    %613 = vmatprep.subr.bf16.mxu0 0
    %614 = vmatpush1.bf16.msra.mxu0 %v467
    %615 = vmatprep.subr.bf16.mxu0 0
    %616 = vmatpush1.bf16.msra.mxu0 %v468
    %617 = vmatprep.subr.bf16.mxu0 0
    %618 = vmatpush1.bf16.msra.mxu0 %v469
    %619 = vmatprep.subr.bf16.mxu0 0
    %620 = vmatpush1.bf16.msra.mxu0 %v470
    %621 = vmatprep.subr.bf16.mxu0 0
    %622 = vmatpush1.bf16.msra.mxu0 %v471
    %623 = vmatprep.subr.bf16.mxu0 0
    %624 = vmatpush1.bf16.msra.mxu0 %v472
    %625 = vmatprep.subr.bf16.mxu0 0
    %626 = vmatpush1.bf16.msra.mxu0 %v473
    %627 = vmatprep.subr.bf16.mxu0 0
    %628 = vmatpush1.bf16.msra.mxu0 %v474
    %629 = vmatprep.subr.bf16.mxu0 0
    %630 = vmatpush1.bf16.msra.mxu0 %v475
    %631 = vmatprep.subr.bf16.mxu0 0
    %632 = vmatpush1.bf16.msra.mxu0 %v476
    %633 = vmatprep.subr.bf16.mxu0 0
    %634 = vmatpush1.bf16.msra.mxu0 %v477
    %635 = vmatprep.subr.bf16.mxu0 0
    %636 = vmatpush1.bf16.msra.mxu0 %v478
    %637 = vmatprep.subr.bf16.mxu0 0
    %638 = vmatpush1.bf16.msra.mxu0 %v479
    %639 = vmatprep.subr.bf16.mxu0 0
    %640 = vmatpush1.bf16.msra.mxu0 %v480
    %641 = vmatprep.mubr.bf16.mxu0 %v137
    %642 = vmatmul.mubr.bf16.gmra.mrb[0].mxu0 %v136
    %v643 = vpop.f32.mrb[0].mxu0
    %v644 = vadd.f32 %v604, %v643
    %v645 = vpop.f32.mrb[0].mxu0
    %v646 = vpop.f32.mrb[0].mxu0
    %v647 = vpop.f32.mrb[0].mxu0
    %648 = vdwg.mxu0
    %649 = vmax.xlane.f32.xlu0 %v644
    %v650 = vpop.xlane.xlu0 %649
    %v651 = vsub.f32 %v644, %v650
    %v652 = vmul.f32 %v651, 1.442695
    %v653 = vpow.pop %v652
    %654 = vadd.xlane.f32.xlu0 %v653
    %v655 = vpop.xlane.xlu0 %654
    %v656 = vlog2.pop %v655
    %v657 = vmul.f32 %v656, 0.6931472
    %v658 = vadd.f32 %v657, %v650
    %v659 = vsub.f32 %v644, %v658
    %v660 = vlaneseq
    %v661 = vand.u32 %v660, 127
    %v662 = vld [vmem:[%s1] sm:$0xff]
    %663 = vset.pattern.permute.xlu0 0
    %664 = vperm.xlu0 %663, %v662
    %v665 = vpop.permute.xlu0 %664
    %vm666 = vcmp.eq.s32.totalorder %v661, %v665
    %v667 = vsel %vm666, %v659, 0.0
    %668 = vadd.xlane.f32.xlu0 %v667
    %v669 = vpop.xlane.xlu0 %668
    %v670 = vsub.f32 0.0, %v669
    %v672 = vrot.slane %v670, 4
    %v674 = vadd.f32 %v670, %v672
    %v675 = vmul.f32 %v674, 0.5
    %vm676 = vcmp.eq.f32.partialorder %v644, %v650
    %v677 = vsel %vm676, %v661, 128
    %v678 = vand.u32 %v677, 65535
    %v679 = vshra.s32 %v677, 16
    %v680 = vcvt.s32.f32 %v678
    %v681 = vcvt.s32.f32 %v679
    %682 = vmin.xlane.f32.xlu0 %v681
    %v683 = vpop.xlane.xlu0 %682
    %vm684 = vcmp.eq.f32.partialorder %v681, %v683
    %v685 = vsel %vm684, %v680, inf
    %686 = vmin.xlane.f32.xlu0 %v685
    %v687 = vpop.xlane.xlu0 %686
    %v688 = vcvt.f32.s32 %v687
    %v689 = vcvt.f32.s32 %v683
    %v690 = vshll.u32 %v689, 16
    %v691 = vadd.s32 %v690, %v688
    %vm692 = vcmp.eq.s32.totalorder %v691, %v662
    %v693 = vsel %vm692, 1, 0
    %v694 = vcvt.s32.f32 %v693
    %v695 = vsub.f32 %v126, %v114
    %v696 = vsub.f32 %v127, %v115
    %v697 = vsub.f32 %v128, %v116
    %v698 = vsub.f32 %v129, %v117
    %v699 = vsub.f32 %v130, %v118
    %v700 = vsub.f32 %v131, %v119
    %v701 = vmul.f32 %v695, %v695
    %v702 = vmul.f32 %v696, %v696
    %v703 = vmul.f32 %v697, %v697
    %v704 = vmul.f32 %v698, %v698
    %v705 = vmul.f32 %v699, %v699
    %v706 = vmul.f32 %v700, %v700
    %v707 = vadd.f32 %v701, %v702
    %v708 = vadd.f32 %v707, %v703
    %v709 = vadd.f32 %v708, %v704
    %v710 = vadd.f32 %v709, %v705
    %v711 = vadd.f32 %v710, %v706
    %712 = vadd.xlane.f32.xlu0 %v711
    %v713 = vpop.xlane.xlu0 %712
    %vm714 = vcmp.eq.s32.totalorder %v661, 0
    %vm715 = vcmp.eq.s32.totalorder %v661, 1
    %vm716 = vcmp.eq.s32.totalorder %v661, 2
    %718 = vset.pattern.permute.xlu0 0
    %719 = vperm.xlu0 %718, %v694
    %v720 = vpop.permute.xlu0 %719
    %v722 = vsel %vm716, %v720, 0.0
    %v723 = vsel %vm715, %v713, %v722
    %725 = vset.pattern.permute.xlu0 0
    %726 = vperm.xlu0 %725, %v675
    %v727 = vpop.permute.xlu0 %726
    %v729 = vsel %vm714, %v727, %v723
    %730 = vst [vmem:[%s6] sm:$0xf] %v729
    // Predicated region
    $region30: #{trainer_forward.1} parent=1 // pred_check
      _
    $region31: #{trainer_forward.1} parent=1 // pred_check_branch
      %732 = sbr.rel (0) target = $region33
    $region32: #{trainer_forward.1} parent=1 // pred_region
      _
    $region33: #{trainer_forward.1} parent=1 // pred_fallthru
      _
    // Predicated region
    $region34: #{trainer_forward.1} parent=1 // pred_check
      _
    $region35: #{trainer_forward.1} parent=1 // pred_check_branch
      %734 = sbr.rel (0) target = $region37
    $region36: #{trainer_forward.1} parent=1 // pred_region
      _
    $region37: #{trainer_forward.1} parent=1 // pred_fallthru
      _
    %735 = vsyncpa [#allocation3], 1

</llo_original>
